<compile_context>
chip_gen: v7x
topology: tpu7x:2x2x1
jax: 0.10.0
libtpu: 0.0.40
codegen_flags: <defaults>
</compile_context>

<pallas_src>
import functools
import math

import jax
import jax.numpy as jnp
import numpy as np
from jax.experimental import pallas as pl
from jax.experimental.pallas import tpu as pltpu


def _round_up(x: int, m: int) -> int:
    return ((x + m - 1) // m) * m


# --------------------------------------------------------------------------
# Kernel 1: feature transform  z = norm_src * (h @ W), emitted in bf16.
# --------------------------------------------------------------------------
def _transform_kernel(h_ref, w_ref, norm_ref, z_ref):
    z = jnp.dot(h_ref[...], w_ref[...], preferred_element_type=jnp.float32)
    z_ref[...] = (z * norm_ref[...]).astype(jnp.bfloat16)


def _transform(h_p, w_p, norm_p, tile_n):
    n_pad, c_in = h_p.shape
    c_pad = w_p.shape[1]
    return pl.pallas_call(
        _transform_kernel,
        out_shape=jax.ShapeDtypeStruct((n_pad, c_pad), jnp.bfloat16),
        grid_spec=pltpu.PrefetchScalarGridSpec(
            num_scalar_prefetch=0,
            grid=(n_pad // tile_n,),
            in_specs=[
                pl.BlockSpec((tile_n, c_in), lambda i: (i, 0)),
                pl.BlockSpec((c_in, c_pad), lambda i: (0, 0)),   # resident
                pl.BlockSpec((tile_n, 1), lambda i: (i, 0)),
            ],
            out_specs=pl.BlockSpec((tile_n, c_pad), lambda i: (i, 0)),
        ),
        compiler_params=pltpu.CompilerParams(
            dimension_semantics=("parallel",)),
    )(h_p, w_p, norm_p)


# --------------------------------------------------------------------------
# Kernel 2: block-sparse aggregation  out = act(norm_dst * (A @ z) + bias).
# --------------------------------------------------------------------------
def _aggregate_kernel(*refs, use_bias: bool, use_relu: bool):
    if use_bias:
        tbl_ref, cnt_ref, adj_ref, z_ref, ndst_ref, b_ref, o_ref = refs
    else:
        tbl_ref, cnt_ref, adj_ref, z_ref, ndst_ref, o_ref = refs
        b_ref = None
    del tbl_ref  # only consumed by the index maps

    i = pl.program_id(0)
    k = pl.program_id(1)
    cnt = cnt_ref[i]

    def contrib():
        # int8 (or bf16) adjacency tile -> bf16 on the VPU, bf16 MXU matmul
        # with f32 accumulation.
        a = adj_ref[...].astype(jnp.bfloat16)
        return jnp.dot(a, z_ref[...], preferred_element_type=jnp.float32)

    @pl.when(k == 0)
    def _():                       # first product: assign (no zero + add)
        o_ref[...] = contrib()

    @pl.when(jnp.logical_and(k > 0, k < cnt))
    def _():                       # remaining nonzero blocks of this dst tile
        o_ref[...] += contrib()

    @pl.when(k == pl.num_programs(1) - 1)
    def _():                       # epilogue: dst norm, bias, activation
        out = o_ref[...] * ndst_ref[...]
        if use_bias:
            out = out + b_ref[...]
        if use_relu:
            out = jnp.maximum(out, 0.0)
        o_ref[...] = out


# --------------------------------------------------------------------------
# One-time static-graph preparation (cache the result across forward calls).
# --------------------------------------------------------------------------
def prepare_graph(adj, norm, *, tile_dst=512, tile_src=2048):
    """Pad + pack the adjacency and build the block-CSR tile schedule.

    Runs host-side once per static graph; the returned dict is reused by
    every gcn_conv call (no per-call N^2 padding/cast traffic).
    """
    adj_np = np.asarray(jax.device_get(adj), dtype=np.float32)
    norm_np = np.asarray(jax.device_get(norm), dtype=np.float32).reshape(-1, 1)
    n = adj_np.shape[0]

    n_pad0 = _round_up(n, 128)
    tm = min(tile_dst, n_pad0)
    tk = min(tile_src, n_pad0)
    n_pad = _round_up(n_pad0, math.lcm(tm, tk))
    # v7x megacore: keep >= 2 dst tiles so the "parallel" axis feeds both TCs.
    if n_pad // tm < 2 and n_pad >= 256:
        tm = n_pad // 2
    nb_i, nb_k = n_pad // tm, n_pad // tk

    adj_pad = np.zeros((n_pad, n_pad), np.float32)
    adj_pad[:n, :n] = adj_np

    # Block-CSR schedule: nonzero src blocks per dst block.  Trailing entries
    # repeat the last valid block index so the pipeline skips their DMA.
    blk_nnz = np.abs(adj_pad).reshape(nb_i, tm, nb_k, tk).sum(axis=(1, 3)) > 0
    counts = blk_nnz.sum(axis=1).astype(np.int32)
    max_count = max(int(counts.max()), 1)
    tbl = np.zeros((nb_i, max_count), np.int32)
    for bi in range(nb_i):
        idx = np.nonzero(blk_nnz[bi])[0]
        if idx.size == 0:
            idx = np.array([0])
        tbl[bi, : idx.size] = idx
        tbl[bi, idx.size:] = idx[-1]
    counts = np.maximum(counts, 1)   # all-zero rows aggregate one zero block

    # int8 stream when lossless (0/1 or small-integer edge weights).
    int8_ok = bool(np.all(adj_np == np.round(adj_np))
                   and np.abs(adj_np).max() <= 127.0)
    if int8_ok:
        adj_packed = jnp.asarray(adj_pad.astype(np.int8))
    else:
        # TODO(synk): per-tile scaled int8 for arbitrary-precision edge weights.
        adj_packed = jnp.asarray(adj_pad).astype(jnp.bfloat16)

    norm_pad = np.zeros((n_pad, 1), np.float32)
    norm_pad[:n, :] = norm_np

    return dict(
        n=n, n_pad=n_pad, tm=tm, tk=tk, max_count=max_count,
        adj=adj_packed,
        norm=jnp.asarray(norm_pad),
        tbl=jnp.asarray(tbl.reshape(-1)),   # flat (nb_i * max_count,) int32
        cnt=jnp.asarray(counts),            # (nb_i,) int32
    )


# --------------------------------------------------------------------------
# Forward wrapper.
# --------------------------------------------------------------------------
def gcn_conv(h, weight, bias, graph, *, activation_relu=True):
    """GCNConv forward using the prepared static graph (see prepare_graph)."""
    n, n_pad = graph["n"], graph["n_pad"]
    tm, tk, max_count = graph["tm"], graph["tk"], graph["max_count"]
    c_in = h.shape[1]
    c_out = weight.shape[1]
    c_pad = _round_up(c_out, 128)   # lane-dense stores; do NOT over-pad past 128

    # bf16 transform inputs (native single-pass MXU path, f32 accumulation).
    h_p = jnp.zeros((n_pad, c_in), jnp.bfloat16).at[:n, :].set(
        h.astype(jnp.bfloat16))
    w_p = jnp.zeros((c_in, c_pad), jnp.bfloat16).at[:, :c_out].set(
        weight.astype(jnp.bfloat16))

    z = _transform(h_p, w_p, graph["norm"], tm)        # (n_pad, c_pad) bf16

    use_bias = bias is not None
    in_specs = [
        # adjacency tile: dst block i, src block from the prefetched schedule
        pl.BlockSpec((tm, tk),
                     lambda i, k, tbl, cnt: (i, tbl[i * max_count + k])),
        # matching z tile
        pl.BlockSpec((tk, c_pad),
                     lambda i, k, tbl, cnt: (tbl[i * max_count + k], 0)),
        # dst norm (epilogue only)
        pl.BlockSpec((tm, 1), lambda i, k, tbl, cnt: (i, 0)),
    ]
    args = [graph["adj"], z, graph["norm"]]
    if use_bias:
        b_p = jnp.zeros((1, c_pad), jnp.float32).at[:, :c_out].set(
            bias.reshape(1, -1).astype(jnp.float32))
        in_specs.append(pl.BlockSpec((1, c_pad), lambda i, k, tbl, cnt: (0, 0)))
        args.append(b_p)

    kern = functools.partial(
        _aggregate_kernel, use_bias=use_bias, use_relu=activation_relu)

    out_p = pl.pallas_call(
        kern,
        out_shape=jax.ShapeDtypeStruct((n_pad, c_pad), jnp.float32),
        grid_spec=pltpu.PrefetchScalarGridSpec(
            num_scalar_prefetch=2,
            grid=(n_pad // tm, max_count),
            in_specs=in_specs,
            out_specs=pl.BlockSpec((tm, c_pad), lambda i, k, tbl, cnt: (i, 0)),
        ),
        compiler_params=pltpu.CompilerParams(
            dimension_semantics=("parallel", "arbitrary"),
            vmem_limit_bytes=32 * 1024 * 1024,
        ),
    )(graph["tbl"], graph["cnt"], *args)

    return out_p[:n, :c_out]


if __name__ == "__main__":
    key = jax.random.PRNGKey(0)
    k_h, k_w, k_adj = jax.random.split(key, 3)

    num_nodes, in_channels, out_channels = 128, 32, 16

    # Node features.
    h = jax.random.normal(k_h, (num_nodes, in_channels), dtype=jnp.float32)

    # Parameter init matching reset_parameters: Xavier-uniform W, zero bias.
    bound = float(np.sqrt(6.0 / (in_channels + out_channels)))
    weight = jax.random.uniform(
        k_w, (in_channels, out_channels), minval=-bound, maxval=bound,
        dtype=jnp.float32)
    bias = jnp.zeros((out_channels,), dtype=jnp.float32)

    # Random static graph: adj[dst, src] = 1 for edge src->dst, no self loops,
    # unweighted edges (edge_weight=None branch of forward).
    adj = (jax.random.uniform(k_adj, (num_nodes, num_nodes)) < 0.1
           ).astype(jnp.float32)
    adj = adj * (1.0 - jnp.eye(num_nodes, dtype=jnp.float32))

    # Node-wise normalization factor: in_degree ** -0.5 (clamped), shape (N,1).
    in_deg = jnp.maximum(adj.sum(axis=1, keepdims=True), 1.0)
    norm = 1.0 / jnp.sqrt(in_deg)

    # One-time static-graph prep (padding, int8 cast, block-CSR schedule).
    graph = prepare_graph(adj, norm)

    out = gcn_conv(h, weight, bias, graph, activation_relu=True)
    out = jax.block_until_ready(out)

    # Reference mirroring the kernel's bf16 arithmetic (tight tolerance).
    h_bf = h.astype(jnp.bfloat16)
    w_bf = weight.astype(jnp.bfloat16)
    z_ref = (norm * jnp.dot(h_bf, w_bf, preferred_element_type=jnp.float32)
             ).astype(jnp.bfloat16).astype(jnp.float32)
    ref_mimic = jnp.maximum(norm * (adj @ z_ref) + bias.reshape(1, -1), 0.0)
    # Pure-f32 module semantics (looser tolerance for the bf16 data path).
    ref_f32 = jnp.maximum(
        norm * (adj @ (norm * (h @ weight))) + bias.reshape(1, -1), 0.0)

    assert out.shape == (num_nodes, out_channels)
    assert jnp.allclose(out, ref_mimic, atol=2e-3, rtol=2e-3)
    assert jnp.allclose(out, ref_f32, atol=5e-2, rtol=5e-2)
    print("KERNEL_OK")
</pallas_src>

<mosaic_0001>
module attributes {stable_mosaic.version = 11 : i64} {
  func.func @_transform_kernel(%arg0: i32, %arg1: memref<128x32xbf16, #tpu.memory_space<vmem>>, %arg2: memref<32x128xbf16, #tpu.memory_space<vmem>>, %arg3: memref<128x1xf32, #tpu.memory_space<vmem>>, %arg4: memref<128x128xbf16, #tpu.memory_space<vmem>>) attributes {dimension_semantics = [#tpu.dimension_semantics<parallel>], iteration_bounds = array<i64: 1>, scalar_prefetch = 0 : i64, scratch_operands = 0 : i64, tpu.core_type = #tpu.core_type<tc>, window_params = [{transform_indices = @transform_0, window_bounds = array<i64: 128, 32>}, {pipeline_mode = #tpu.pipeline_mode<synchronous>, transform_indices = @transform_1, window_bounds = array<i64: 32, 128>}, {transform_indices = @transform_2, window_bounds = array<i64: 128, 1>}, {transform_indices = @transform_3, window_bounds = array<i64: 128, 128>}]} {
    %c0 = arith.constant 0 : index
    %c0_0 = arith.constant 0 : index
    %0 = vector.load %arg1[%c0, %c0_0] : memref<128x32xbf16, #tpu.memory_space<vmem>>, vector<128x32xbf16>
    %c0_1 = arith.constant 0 : index
    %c0_2 = arith.constant 0 : index
    %1 = vector.load %arg2[%c0_1, %c0_2] : memref<32x128xbf16, #tpu.memory_space<vmem>>, vector<32x128xbf16>
    %cst = arith.constant dense<0.000000e+00> : vector<128x128xf32>
    %2 = tpu.matmul %0, %1, %cst {dimension_numbers = #tpu.dot_dimension_numbers<[1], [0], [0], [1], [0, 0, 1, 1], [], []>} : vector<128x32xbf16>, vector<32x128xbf16>, vector<128x128xf32> -> vector<128x128xf32>
    %c0_3 = arith.constant 0 : index
    %c0_4 = arith.constant 0 : index
    %3 = vector.load %arg3[%c0_3, %c0_4] : memref<128x1xf32, #tpu.memory_space<vmem>>, vector<128x1xf32>
    %4 = vector.broadcast %3 : vector<128x1xf32> to vector<128x128xf32>
    %5 = arith.mulf %2, %4 : vector<128x128xf32>
    %6 = arith.truncf %5 : vector<128x128xf32> to vector<128x128xbf16>
    %c0_5 = arith.constant 0 : index
    %c0_6 = arith.constant 0 : index
    %7 = vector.load %arg4[%c0_5, %c0_6] : memref<128x128xbf16, #tpu.memory_space<vmem>>, vector<128x128xbf16>
    tpu.vector_store %arg4[%c0_5, %c0_6], %6 {strides = array<i32>} : memref<128x128xbf16, #tpu.memory_space<vmem>>, vector<128x128xbf16>,
    return
  }
  func.func @transform_0(%arg0: i32) -> (i32, i32) {
    %c0_i32 = arith.constant 0 : i32
    %c0_i32_0 = arith.constant 0 : i32
    return %arg0, %c0_i32 : i32, i32
  }
  func.func @transform_1(%arg0: i32) -> (i32, i32) {
    %c0_i32 = arith.constant 0 : i32
    %c0_i32_0 = arith.constant 0 : i32
    %c0_i32_1 = arith.constant 0 : i32
    return %c0_i32, %c0_i32_0 : i32, i32
  }
  func.func @transform_2(%arg0: i32) -> (i32, i32) {
    %c0_i32 = arith.constant 0 : i32
    %c0_i32_0 = arith.constant 0 : i32
    return %arg0, %c0_i32 : i32, i32
  }
  func.func @transform_3(%arg0: i32) -> (i32, i32) {
    %c0_i32 = arith.constant 0 : i32
    %c0_i32_0 = arith.constant 0 : i32
    return %arg0, %c0_i32 : i32, i32
  }
}

</mosaic_0001>

<llo_original>
// kernel: tpu_custom_call.1
$region0: #{tpu_custom_call.1}
  #allocation0 [shape = 'u32[]', space=smem, size = 0x4, offset = 0x4, fixed_abs, tag = 'smem constant byte address 0x4 - core index']
  #allocation1 [shape = 'u32[144,128]{1,0:T(1,128)}', space=vmem, size = 0x12000, scoped, tag = 'internal scratch']
  %s0 = inlined_call_operand.vmem [shape: bf16[128,32], index: 0, kind: input, shape index: {}]
  %s1 = inlined_call_operand.vmem [shape: bf16[32,128], index: 1, kind: input, shape index: {}]
  %s2 = inlined_call_operand.vmem [shape: f32[128,1], index: 2, kind: input, shape index: {}]
  %s3 = inlined_call_operand.hbm [shape: bf16[128,128], index: 3, kind: output, shape index: {}]
  %s4 = sld [smem:[#allocation0]]
  $region22: #{tpu_custom_call.1} parent=0
    _
  %s6 = ssub.s32 1, %s4
  %s7 = scalar_select 0, %s6, %s4
  $region1: #{tpu_custom_call.1} parent=0
    #allocation2 [shape = 'u8[32768]{0}', space=vmem, size = 0x8000, scoped, tag = 'output window, operand 0, single buffered']
    #allocation3 [shape = 's32[1]{0}', space=sflag, size = 0x4, scoped, tag = 'scoped memory for tpu_custom_call.1']
    %8 = vsyncpa [#allocation3], 0
    // Predicated region
    $region2: #{tpu_custom_call.1} parent=1 // pred_check
      _
    $region3: #{tpu_custom_call.1} parent=1 // pred_check_branch
      %10 = sbr.rel (0) target = $region5
    $region4: #{tpu_custom_call.1} parent=1 // pred_region
      _
    $region5: #{tpu_custom_call.1} parent=1 // pred_fallthru
      _
    // Predicated region
    $region6: #{tpu_custom_call.1} parent=1 // pred_check
      _
    $region7: #{tpu_custom_call.1} parent=1 // pred_check_branch
      %12 = sbr.rel (0) target = $region9
    $region8: #{tpu_custom_call.1} parent=1 // pred_region
      _
    $region9: #{tpu_custom_call.1} parent=1 // pred_fallthru
      _
    // Predicated region
    $region10: #{tpu_custom_call.1} parent=1 // pred_check
      _
    $region11: #{tpu_custom_call.1} parent=1 // pred_check_branch
      %14 = sbr.rel (0) target = $region13
    $region12: #{tpu_custom_call.1} parent=1 // pred_region
      _
    $region13: #{tpu_custom_call.1} parent=1 // pred_fallthru
      _
    %v16 = vld [vmem:[%s0] sm:$0xf]
    %v17 = vld [vmem:[%s0 + $0x4] sm:$0xf]
    %v18 = vld [vmem:[%s0 + $0x8] sm:$0xf]
    %v19 = vld [vmem:[%s0 + $0xc] sm:$0xf]
    %v20 = vld [vmem:[%s0 + $0x10] sm:$0xf]
    %v21 = vld [vmem:[%s0 + $0x14] sm:$0xf]
    %v22 = vld [vmem:[%s0 + $0x18] sm:$0xf]
    %v23 = vld [vmem:[%s0 + $0x1c] sm:$0xf]
    %v24 = vld [vmem:[%s0 + $0x20] sm:$0xf]
    %v25 = vld [vmem:[%s0 + $0x24] sm:$0xf]
    %v26 = vld [vmem:[%s0 + $0x28] sm:$0xf]
    %v27 = vld [vmem:[%s0 + $0x2c] sm:$0xf]
    %v28 = vld [vmem:[%s0 + $0x30] sm:$0xf]
    %v29 = vld [vmem:[%s0 + $0x34] sm:$0xf]
    %v30 = vld [vmem:[%s0 + $0x38] sm:$0xf]
    %v31 = vld [vmem:[%s0 + $0x3c] sm:$0xf]
    %v32 = vld [vmem:[%s1] sm:$0xf]
    %v33 = vld [vmem:[%s1 + $0x4] sm:$0xf]
    %v34 = vld [vmem:[%s1 + $0x8] sm:$0xf]
    %v35 = vld [vmem:[%s1 + $0xc] sm:$0xf]
    %v52 = vunpack.c.l.b16 %v16
    %v53 = vunpack.c.l.b16 %v17
    %v54 = vunpack.c.l.b16 %v18
    %v55 = vunpack.c.l.b16 %v19
    %v56 = vunpack.c.l.b16 %v20
    %v57 = vunpack.c.l.b16 %v21
    %v58 = vunpack.c.l.b16 %v22
    %v59 = vunpack.c.l.b16 %v23
    %v60 = vunpack.c.l.b16 %v24
    %v61 = vunpack.c.l.b16 %v25
    %v62 = vunpack.c.l.b16 %v26
    %v63 = vunpack.c.l.b16 %v27
    %v64 = vunpack.c.l.b16 %v28
    %v65 = vunpack.c.l.b16 %v29
    %v66 = vunpack.c.l.b16 %v30
    %v67 = vunpack.c.l.b16 %v31
    %v68 = vpack.c.b16 %v53, %v52
    %v69 = vpack.c.b16 %v55, %v54
    %v70 = vpack.c.b16 %v57, %v56
    %v71 = vpack.c.b16 %v59, %v58
    %v72 = vpack.c.b16 %v61, %v60
    %v73 = vpack.c.b16 %v63, %v62
    %v74 = vpack.c.b16 %v65, %v64
    %v75 = vpack.c.b16 %v67, %v66
    %v80 = vunpack.c.l.b16 %v32
    %v81 = vunpack.c.l.b16 %v33
    %v82 = vunpack.c.l.b16 %v34
    %v83 = vunpack.c.l.b16 %v35
    %v84 = vpack.c.b16 %v81, %v80
    %v85 = vpack.c.b16 %v83, %v82
    %vm88 = vcmask 261120
    %v90 = vsel %vm88, %v68, 0
    %v93 = vsel %vm88, %v69, 0
    %v96 = vsel %vm88, %v70, 0
    %v99 = vsel %vm88, %v71, 0
    %v102 = vsel %vm88, %v72, 0
    %v105 = vsel %vm88, %v73, 0
    %v108 = vsel %vm88, %v74, 0
    %v111 = vsel %vm88, %v75, 0
    %113 = vmatprep.subr.bf16.mxu0 0
    %114 = vmatpush1.bf16.msra.mxu0 %v84
    %115 = vmatprep.subr.bf16.mxu0 0
    %116 = vmatpush1.bf16.msra.mxu0 %v85
    %117 = vmatprep.subr.bf16.mxu0 0
    %118 = vmatpush1.bf16.msra.mxu0 0
    %119 = vmatprep.subr.bf16.mxu0 0
    %120 = vmatpush1.bf16.msra.mxu0 0
    %121 = vmatprep.subr.bf16.mxu0 0
    %122 = vmatpush1.bf16.msra.mxu0 0
    %123 = vmatprep.subr.bf16.mxu0 0
    %124 = vmatpush1.bf16.msra.mxu0 0
    %125 = vmatprep.subr.bf16.mxu0 0
    %126 = vmatpush1.bf16.msra.mxu0 0
    %127 = vmatprep.subr.bf16.mxu0 0
    %128 = vmatpush1.bf16.msra.mxu0 0
    %129 = vmatprep.subr.bf16.mxu0 0
    %130 = vmatpush1.bf16.msra.mxu0 0
    %131 = vmatprep.subr.bf16.mxu0 0
    %132 = vmatpush1.bf16.msra.mxu0 0
    %133 = vmatprep.subr.bf16.mxu0 0
    %134 = vmatpush1.bf16.msra.mxu0 0
    %135 = vmatprep.subr.bf16.mxu0 0
    %136 = vmatpush1.bf16.msra.mxu0 0
    %137 = vmatprep.subr.bf16.mxu0 0
    %138 = vmatpush1.bf16.msra.mxu0 0
    %139 = vmatprep.subr.bf16.mxu0 0
    %140 = vmatpush1.bf16.msra.mxu0 0
    %141 = vmatprep.subr.bf16.mxu0 0
    %142 = vmatpush1.bf16.msra.mxu0 0
    %143 = vmatprep.subr.bf16.mxu0 0
    %144 = vmatpush1.bf16.msra.mxu0 0
    %145 = vmatprep.mubr.bf16.mxu0 0
    %146 = vmatmul.mubr.bf16.gmra.mrb[0].mxu0 %v90
    %v147 = vpop.f32.mrb[0].mxu0
    %v148 = vadd.f32 0.0, %v147
    %v149 = vpop.f32.mrb[0].mxu0
    %v150 = vpop.f32.mrb[0].mxu0
    %v151 = vadd.f32 0.0, %v150
    %v152 = vpop.f32.mrb[0].mxu0
    %153 = vmatprep.mubr.bf16.mxu0 0
    %154 = vmatmul.mubr.bf16.gmra.mrb[0].mxu0 %v93
    %v155 = vpop.f32.mrb[0].mxu0
    %v156 = vadd.f32 0.0, %v155
    %v157 = vpop.f32.mrb[0].mxu0
    %v158 = vpop.f32.mrb[0].mxu0
    %v159 = vadd.f32 0.0, %v158
    %v160 = vpop.f32.mrb[0].mxu0
    %161 = vmatprep.mubr.bf16.mxu0 0
    %162 = vmatmul.mubr.bf16.gmra.mrb[0].mxu0 %v96
    %v163 = vpop.f32.mrb[0].mxu0
    %v164 = vadd.f32 0.0, %v163
    %v165 = vpop.f32.mrb[0].mxu0
    %v166 = vpop.f32.mrb[0].mxu0
    %v167 = vadd.f32 0.0, %v166
    %v168 = vpop.f32.mrb[0].mxu0
    %169 = vmatprep.mubr.bf16.mxu0 0
    %170 = vmatmul.mubr.bf16.gmra.mrb[0].mxu0 %v99
    %v171 = vpop.f32.mrb[0].mxu0
    %v172 = vadd.f32 0.0, %v171
    %v173 = vpop.f32.mrb[0].mxu0
    %v174 = vpop.f32.mrb[0].mxu0
    %v175 = vadd.f32 0.0, %v174
    %v176 = vpop.f32.mrb[0].mxu0
    %177 = vmatprep.mubr.bf16.mxu0 0
    %178 = vmatmul.mubr.bf16.gmra.mrb[0].mxu0 %v102
    %v179 = vpop.f32.mrb[0].mxu0
    %v180 = vadd.f32 0.0, %v179
    %v181 = vpop.f32.mrb[0].mxu0
    %v182 = vpop.f32.mrb[0].mxu0
    %v183 = vadd.f32 0.0, %v182
    %v184 = vpop.f32.mrb[0].mxu0
    %185 = vmatprep.mubr.bf16.mxu0 0
    %186 = vmatmul.mubr.bf16.gmra.mrb[0].mxu0 %v105
    %v187 = vpop.f32.mrb[0].mxu0
    %v188 = vadd.f32 0.0, %v187
    %v189 = vpop.f32.mrb[0].mxu0
    %v190 = vpop.f32.mrb[0].mxu0
    %v191 = vadd.f32 0.0, %v190
    %v192 = vpop.f32.mrb[0].mxu0
    %193 = vmatprep.mubr.bf16.mxu0 0
    %194 = vmatmul.mubr.bf16.gmra.mrb[0].mxu0 %v108
    %v195 = vpop.f32.mrb[0].mxu0
    %v196 = vadd.f32 0.0, %v195
    %v197 = vpop.f32.mrb[0].mxu0
    %v198 = vpop.f32.mrb[0].mxu0
    %v199 = vadd.f32 0.0, %v198
    %v200 = vpop.f32.mrb[0].mxu0
    %201 = vmatprep.mubr.bf16.mxu0 0
    %202 = vmatmul.mubr.bf16.gmra.mrb[0].mxu0 %v111
    %v203 = vpop.f32.mrb[0].mxu0
    %v204 = vadd.f32 0.0, %v203
    %v205 = vpop.f32.mrb[0].mxu0
    %v206 = vpop.f32.mrb[0].mxu0
    %v207 = vadd.f32 0.0, %v206
    %v208 = vpop.f32.mrb[0].mxu0
    %209 = vdwg.mxu0
    %v210 = vld [vmem:[%s2] sm:$0xff]
    %v211 = vld [vmem:[%s2 + $0x8] sm:$0xff]
    %v212 = vld [vmem:[%s2 + $0x10] sm:$0xff]
    %v213 = vld [vmem:[%s2 + $0x18] sm:$0xff]
    %v214 = vld [vmem:[%s2 + $0x20] sm:$0xff]
    %v215 = vld [vmem:[%s2 + $0x28] sm:$0xff]
    %v216 = vld [vmem:[%s2 + $0x30] sm:$0xff]
    %v217 = vld [vmem:[%s2 + $0x38] sm:$0xff]
    %v218 = vld [vmem:[%s2 + $0x40] sm:$0xff]
    %v219 = vld [vmem:[%s2 + $0x48] sm:$0xff]
    %v220 = vld [vmem:[%s2 + $0x50] sm:$0xff]
    %v221 = vld [vmem:[%s2 + $0x58] sm:$0xff]
    %v222 = vld [vmem:[%s2 + $0x60] sm:$0xff]
    %v223 = vld [vmem:[%s2 + $0x68] sm:$0xff]
    %v224 = vld [vmem:[%s2 + $0x70] sm:$0xff]
    %v225 = vld [vmem:[%s2 + $0x78] sm:$0xff]
    %227 = vset.pattern.permute.xlu0 0
    %228 = vperm.xlu0 %227, %v210
    %v229 = vpop.permute.xlu0 %228
    %232 = vset.pattern.permute.xlu0 0
    %233 = vperm.xlu0 %232, %v211
    %v234 = vpop.permute.xlu0 %233
    %237 = vset.pattern.permute.xlu0 0
    %238 = vperm.xlu0 %237, %v212
    %v239 = vpop.permute.xlu0 %238
    %242 = vset.pattern.permute.xlu0 0
    %243 = vperm.xlu0 %242, %v213
    %v244 = vpop.permute.xlu0 %243
    %247 = vset.pattern.permute.xlu0 0
    %248 = vperm.xlu0 %247, %v214
    %v249 = vpop.permute.xlu0 %248
    %252 = vset.pattern.permute.xlu0 0
    %253 = vperm.xlu0 %252, %v215
    %v254 = vpop.permute.xlu0 %253
    %257 = vset.pattern.permute.xlu0 0
    %258 = vperm.xlu0 %257, %v216
    %v259 = vpop.permute.xlu0 %258
    %262 = vset.pattern.permute.xlu0 0
    %263 = vperm.xlu0 %262, %v217
    %v264 = vpop.permute.xlu0 %263
    %267 = vset.pattern.permute.xlu0 0
    %268 = vperm.xlu0 %267, %v218
    %v269 = vpop.permute.xlu0 %268
    %272 = vset.pattern.permute.xlu0 0
    %273 = vperm.xlu0 %272, %v219
    %v274 = vpop.permute.xlu0 %273
    %277 = vset.pattern.permute.xlu0 0
    %278 = vperm.xlu0 %277, %v220
    %v279 = vpop.permute.xlu0 %278
    %282 = vset.pattern.permute.xlu0 0
    %283 = vperm.xlu0 %282, %v221
    %v284 = vpop.permute.xlu0 %283
    %287 = vset.pattern.permute.xlu0 0
    %288 = vperm.xlu0 %287, %v222
    %v289 = vpop.permute.xlu0 %288
    %292 = vset.pattern.permute.xlu0 0
    %293 = vperm.xlu0 %292, %v223
    %v294 = vpop.permute.xlu0 %293
    %297 = vset.pattern.permute.xlu0 0
    %298 = vperm.xlu0 %297, %v224
    %v299 = vpop.permute.xlu0 %298
    %302 = vset.pattern.permute.xlu0 0
    %303 = vperm.xlu0 %302, %v225
    %v304 = vpop.permute.xlu0 %303
    %v306 = vmul.f32 %v148, %v229
    %v307 = vmul.f32 %v151, %v234
    %v308 = vmul.f32 %v156, %v239
    %v309 = vmul.f32 %v159, %v244
    %v310 = vmul.f32 %v164, %v249
    %v311 = vmul.f32 %v167, %v254
    %v312 = vmul.f32 %v172, %v259
    %v313 = vmul.f32 %v175, %v264
    %v314 = vmul.f32 %v180, %v269
    %v315 = vmul.f32 %v183, %v274
    %v316 = vmul.f32 %v188, %v279
    %v317 = vmul.f32 %v191, %v284
    %v318 = vmul.f32 %v196, %v289
    %v319 = vmul.f32 %v199, %v294
    %v320 = vmul.f32 %v204, %v299
    %v321 = vmul.f32 %v207, %v304
    %v322 = vpack.c.bf16 %v307, %v306
    %v323 = vpack.c.bf16 %v309, %v308
    %v324 = vpack.c.bf16 %v311, %v310
    %v325 = vpack.c.bf16 %v313, %v312
    %v326 = vpack.c.bf16 %v315, %v314
    %v327 = vpack.c.bf16 %v317, %v316
    %v328 = vpack.c.bf16 %v319, %v318
    %v329 = vpack.c.bf16 %v321, %v320
    %v338 = vunpack.c.l.b16 %v322
    %v339 = vunpack.c.h.b16 %v322
    %v340 = vunpack.c.l.b16 %v323
    %v341 = vunpack.c.h.b16 %v323
    %v342 = vunpack.c.l.b16 %v324
    %v343 = vunpack.c.h.b16 %v324
    %v344 = vunpack.c.l.b16 %v325
    %v345 = vunpack.c.h.b16 %v325
    %v346 = vunpack.c.l.b16 %v326
    %v347 = vunpack.c.h.b16 %v326
    %v348 = vunpack.c.l.b16 %v327
    %v349 = vunpack.c.h.b16 %v327
    %v350 = vunpack.c.l.b16 %v328
    %v351 = vunpack.c.h.b16 %v328
    %v352 = vunpack.c.l.b16 %v329
    %v353 = vunpack.c.h.b16 %v329
    %v354 = vpack.c.b16 %v338, %v338
    %v355 = vpack.c.b16 %v339, %v339
    %v356 = vpack.c.b16 %v340, %v340
    %v357 = vpack.c.b16 %v341, %v341
    %v358 = vpack.c.b16 %v342, %v342
    %v359 = vpack.c.b16 %v343, %v343
    %v360 = vpack.c.b16 %v344, %v344
    %v361 = vpack.c.b16 %v345, %v345
    %v362 = vpack.c.b16 %v346, %v346
    %v363 = vpack.c.b16 %v347, %v347
    %v364 = vpack.c.b16 %v348, %v348
    %v365 = vpack.c.b16 %v349, %v349
    %v366 = vpack.c.b16 %v350, %v350
    %v367 = vpack.c.b16 %v351, %v351
    %v368 = vpack.c.b16 %v352, %v352
    %v369 = vpack.c.b16 %v353, %v353
    %386 = vst [vmem:[#allocation2] sm:$0xf] %v354
    %387 = vst [vmem:[#allocation2 + $0x4] sm:$0xf] %v355
    %388 = vst [vmem:[#allocation2 + $0x8] sm:$0xf] %v356
    %389 = vst [vmem:[#allocation2 + $0xc] sm:$0xf] %v357
    %390 = vst [vmem:[#allocation2 + $0x10] sm:$0xf] %v358
    %391 = vst [vmem:[#allocation2 + $0x14] sm:$0xf] %v359
    %392 = vst [vmem:[#allocation2 + $0x18] sm:$0xf] %v360
    %393 = vst [vmem:[#allocation2 + $0x1c] sm:$0xf] %v361
    %394 = vst [vmem:[#allocation2 + $0x20] sm:$0xf] %v362
    %395 = vst [vmem:[#allocation2 + $0x24] sm:$0xf] %v363
    %396 = vst [vmem:[#allocation2 + $0x28] sm:$0xf] %v364
    %397 = vst [vmem:[#allocation2 + $0x2c] sm:$0xf] %v365
    %398 = vst [vmem:[#allocation2 + $0x30] sm:$0xf] %v366
    %399 = vst [vmem:[#allocation2 + $0x34] sm:$0xf] %v367
    %400 = vst [vmem:[#allocation2 + $0x38] sm:$0xf] %v368
    %401 = vst [vmem:[#allocation2 + $0x3c] sm:$0xf] %v369
    // Predicated region
    $region14: #{tpu_custom_call.1} parent=1 // pred_check
      _
    $region15: #{tpu_custom_call.1} parent=1 // pred_check_branch
      %403 = sbr.rel (0) target = $region17
    $region16: #{tpu_custom_call.1} parent=1 // pred_region
      %s405 = ssub.s32 1024, 1024
      %406 = vsyncadd [#allocation3], %s405
      %s407 = sshll.u32 [#allocation2], 4
      %s408 = int_to_ptr.vmem [resolvable:$true] %s407
      %413 = dma.vmem_to_hbm [thread:$0]  %s408, 1024, %s3, [#allocation3], 64, 64, 4
    $region17: #{tpu_custom_call.1} parent=1 // pred_fallthru
      _
    // Predicated region
    $region18: #{tpu_custom_call.1} parent=1 // pred_check
      _
    $region19: #{tpu_custom_call.1} parent=1 // pred_check_branch
      %415 = sbr.rel (0) target = $region21
    $region20: #{tpu_custom_call.1} parent=1 // pred_region
      %416 = dma.done [#allocation3], 1024
    $region21: #{tpu_custom_call.1} parent=1 // pred_fallthru
      _
    %417 = vsyncpa [#allocation3], 1

</llo_original>
